<compile_context>
chip_gen: v7x
topology: tpu7x:2x2x1
jax: 0.10.0
libtpu: 0.0.40
codegen_flags: <defaults>
</compile_context>

<pallas_src>
import jax
import jax.numpy as jnp
from jax.experimental import pallas as pl
from jax.experimental.pallas import tpu as pltpu


def _trim_copy_kernel(x_ref, o_ref):
    # x_ref: (tr, tl_in) VMEM tile, o_ref: (tr, tl_out) VMEM tile, tl_out <= tl_in.
    # Bare copy of the kept lane prefix — no extra VPU work (on v5e the single
    # vector-store slot is the critical resource for a VMEM copy).
    o_ref[...] = x_ref[:, : o_ref.shape[-1]]


# Tile sizing (f32 numbers):
#   row tile 256   -> multiple of 8/16/32 sublanes (f32 / bf16 / int8 packing)
#   lane tile 2048 -> multiple of 128 lanes; 256*2048*4B = 2 MiB per tile
# Double-buffered (in + out) => ~8 MiB of VMEM, which fits the scoped limit on
# v5e (16 MiB default), v6e (32/128 MiB) and v7x (32/64 MiB), while each grid
# step is big enough to amortize the ~0.35 us per-step overhead.
_ROW_TILE = 256
_LANE_TILE = 2048


def trim1d(x: jax.Array, trim_size: int) -> jax.Array:
    """Pallas equivalent of Trim1d.forward: x[:, :, :-trim_size].contiguous()."""
    assert trim_size > 0, "trim_size must be positive (matches x[..., :-trim_size])"
    N, C, L = x.shape
    L_out = L - trim_size
    assert L_out > 0, "trim_size must be smaller than the sequence length"

    # Flatten (N, C) into one dense row axis: the trim only touches the last
    # axis, and an (N*C, L) view keeps every vreg sublane utilized even when
    # C < 8 and gives the pipeline plenty of grid steps to overlap DMAs.
    R = N * C
    x2 = x.reshape(R, L)

    tr = R if R <= _ROW_TILE else _ROW_TILE  # full extent, or an 8/16/32-multiple

    if L_out >= 128:
        # Lane-dense tiling: every tile is a multiple of 128 lanes, so only the
        # final remainder tile (if any) issues masked vst stores.
        tl = min(_LANE_TILE, (L_out // 128) * 128)
        grid = (pl.cdiv(R, tr), pl.cdiv(L_out, tl))
        in_spec = pl.BlockSpec((tr, tl), lambda i, j: (i, j))
        out_spec = pl.BlockSpec((tr, tl), lambda i, j: (i, j))
    else:
        # Short signals (e.g. the demo shape): use each array's full lane
        # extent (allowed by the (8,128) rule) and tile only over rows.
        grid = (pl.cdiv(R, tr), 1)
        in_spec = pl.BlockSpec((tr, L), lambda i, j: (i, 0))
        out_spec = pl.BlockSpec((tr, L_out), lambda i, j: (i, 0))

    # NOTE: an even leaner variant is a single strided HBM->HBM DMA
    # (memory_space=pl.ANY + pltpu.make_async_copy(x.at[:, :L_out], out, sem)),
    # skipping the VMEM round-trip entirely; the tiled BlockSpec copy is kept
    # here because auto-pipelined rectangular windows are the portable,
    # known-good path on all three generations and are already HBM-bound.

    out2 = pl.pallas_call(
        _trim_copy_kernel,
        out_shape=jax.ShapeDtypeStruct((R, L_out), x.dtype),
        grid_spec=pltpu.PrefetchScalarGridSpec(
            num_scalar_prefetch=0,
            grid=grid,
            in_specs=[in_spec],
            out_specs=out_spec,
        ),
        compiler_params=pltpu.CompilerParams(
            # Both axes are independent copies -> shard across v7x's two
            # TensorCores (harmless on single-TC v5e/v6e).
            dimension_semantics=("parallel", "parallel"),
            # Explicit scoped-VMEM budget: ~8 MiB of double-buffered tiles,
            # large headroom on every generation (v7x physical = 64 MiB).
            vmem_limit_bytes=32 * 1024 * 1024,
        ),
    )(x2)

    return out2.reshape(N, C, L_out)


if __name__ == "__main__":
    # Small NCL shapes consistent with the 1-D signal Trim1d expects.
    N, C, L = 2, 4, 16
    trim_size = 3

    key = jax.random.PRNGKey(0)
    x = jax.random.normal(key, (N, C, L), dtype=jnp.float32)

    y = trim1d(x, trim_size)
    jax.block_until_ready(y)

    # Reference check against plain JAX slicing (same semantics as PyTorch).
    y_ref = x[:, :, :-trim_size]
    assert y.shape == (N, C, L - trim_size), y.shape
    assert jnp.array_equal(y, y_ref), "mismatch vs reference slice"

    print("KERNEL_OK")
</pallas_src>

<mosaic_0001>
module attributes {stable_mosaic.version = 11 : i64} {
  func.func @_trim_copy_kernel(%arg0: i32, %arg1: i32, %arg2: memref<8x16xf32, #tpu.memory_space<vmem>>, %arg3: memref<8x13xf32, #tpu.memory_space<vmem>>) attributes {dimension_semantics = [#tpu.dimension_semantics<parallel>, #tpu.dimension_semantics<parallel>], iteration_bounds = array<i64: 1, 1>, scalar_prefetch = 0 : i64, scratch_operands = 0 : i64, tpu.core_type = #tpu.core_type<tc>, window_params = [{transform_indices = @transform_0, window_bounds = array<i64: 8, 16>}, {transform_indices = @transform_1, window_bounds = array<i64: 8, 13>}]} {
    %c0 = arith.constant 0 : index
    %c0_0 = arith.constant 0 : index
    %0 = vector.load %arg2[%c0, %c0_0] : memref<8x16xf32, #tpu.memory_space<vmem>>, vector<8x13xf32>
    %c0_1 = arith.constant 0 : index
    %c0_2 = arith.constant 0 : index
    %1 = vector.load %arg3[%c0_1, %c0_2] : memref<8x13xf32, #tpu.memory_space<vmem>>, vector<8x13xf32>
    tpu.vector_store %arg3[%c0_1, %c0_2], %0 {strides = array<i32>} : memref<8x13xf32, #tpu.memory_space<vmem>>, vector<8x13xf32>,
    return
  }
  func.func @transform_0(%arg0: i32, %arg1: i32) -> (i32, i32) {
    %c0_i32 = arith.constant 0 : i32
    %c0_i32_0 = arith.constant 0 : i32
    return %arg0, %c0_i32 : i32, i32
  }
  func.func @transform_1(%arg0: i32, %arg1: i32) -> (i32, i32) {
    %c0_i32 = arith.constant 0 : i32
    %c0_i32_0 = arith.constant 0 : i32
    return %arg0, %c0_i32 : i32, i32
  }
}

</mosaic_0001>

<llo_original>
// kernel: tpu_custom_call.1
$region0: #{tpu_custom_call.1}
  #allocation0 [shape = 'u32[]', space=smem, size = 0x4, offset = 0x4, fixed_abs, tag = 'smem constant byte address 0x4 - core index']
  #allocation1 [shape = 'u32[144,128]{1,0:T(1,128)}', space=vmem, size = 0x12000, scoped, tag = 'internal scratch']
  %s0 = inlined_call_operand.hbm [shape: f32[8,16], index: 0, kind: input, shape index: {}]
  %s1 = inlined_call_operand.hbm [shape: f32[8,13], index: 1, kind: output, shape index: {}]
  %s2 = sld [smem:[#allocation0]]
  $region18: #{tpu_custom_call.1} parent=0
    _
  %s4 = ssub.s32 1, %s2
  %s5 = scalar_select 0, %s4, %s2
  $region1: #{tpu_custom_call.1} parent=0
    #allocation2 [shape = 'u8[4096]{0}', space=vmem, size = 0x1000, scoped, tag = 'input window, operand 0, single buffered']
    #allocation3 [shape = 's32[1]{0}', space=sflag, size = 0x4, scoped, tag = 'scoped memory for tpu_custom_call.1']
    #allocation4 [shape = 's32[1]{0}', space=sflag, size = 0x4, scoped, tag = 'scoped memory for tpu_custom_call.1']
    #allocation5 [shape = 'u8[4096]{0}', space=vmem, size = 0x1000, scoped, tag = 'output window, operand 0, single buffered']
    %6 = vsyncpa [#allocation3], 0
    %7 = vsyncpa [#allocation4], 0
    // Predicated region
    $region2: #{tpu_custom_call.1} parent=1 // pred_check
      _
    $region3: #{tpu_custom_call.1} parent=1 // pred_check_branch
      %9 = sbr.rel (0) target = $region5
    $region4: #{tpu_custom_call.1} parent=1 // pred_region
      %s11 = ssub.s32 128, 128
      %12 = vsyncadd [#allocation3], %s11
      %s14 = sshll.u32 [#allocation2], 4
      %s15 = int_to_ptr.vmem [resolvable:$true] %s14
      %17 = dma.hbm_to_vmem [thread:$0]  %s0, 128, %s15, [#allocation3]
    $region5: #{tpu_custom_call.1} parent=1 // pred_fallthru
      _
    // Predicated region
    $region6: #{tpu_custom_call.1} parent=1 // pred_check
      _
    $region7: #{tpu_custom_call.1} parent=1 // pred_check_branch
      %19 = sbr.rel (0) target = $region9
    $region8: #{tpu_custom_call.1} parent=1 // pred_region
      %20 = dma.done [#allocation3], 128
    $region9: #{tpu_custom_call.1} parent=1 // pred_fallthru
      _
    %v21 = vld [vmem:[#allocation2] sm:$0xff]
    %vm22 = vcmask 105472
    %23 = vst.msk [vmem:[#allocation5] sm:$0xff] %vm22, %v21
    // Predicated region
    $region10: #{tpu_custom_call.1} parent=1 // pred_check
      _
    $region11: #{tpu_custom_call.1} parent=1 // pred_check_branch
      %25 = sbr.rel (0) target = $region13
    $region12: #{tpu_custom_call.1} parent=1 // pred_region
      %s27 = ssub.s32 128, 128
      %28 = vsyncadd [#allocation4], %s27
      %s30 = sshll.u32 [#allocation5], 4
      %s31 = int_to_ptr.vmem [resolvable:$true] %s30
      %33 = dma.vmem_to_hbm [thread:$0]  %s31, 128, %s1, [#allocation4]
    $region13: #{tpu_custom_call.1} parent=1 // pred_fallthru
      _
    // Predicated region
    $region14: #{tpu_custom_call.1} parent=1 // pred_check
      _
    $region15: #{tpu_custom_call.1} parent=1 // pred_check_branch
      %35 = sbr.rel (0) target = $region17
    $region16: #{tpu_custom_call.1} parent=1 // pred_region
      %36 = dma.done [#allocation4], 128
    $region17: #{tpu_custom_call.1} parent=1 // pred_fallthru
      _
    %37 = vsyncpa [#allocation3], 1
    %38 = vsyncpa [#allocation4], 1

</llo_original>
